<compile_context>
chip_gen: v5e
topology: v5e:2x2
jax: 0.10.0
libtpu: 0.0.40
codegen_flags: <defaults>
</compile_context>

<pallas_src>
import functools

import jax
import jax.numpy as jnp
from jax.experimental import pallas as pl
from jax.experimental.pallas import tpu as pltpu


def _round_up(x, m):
    return ((x + m - 1) // m) * m


def encoder_kernel(x_ref,
                   w1_ref, b1_ref,
                   w2_ref, b2_ref,
                   w3_ref, b3_ref,
                   out_ref):
    """Fused 3-layer MLP (BN already folded into W/b): Lin->LReLU x2 -> Lin."""
    x = x_ref[...]

    # Layer 1 (Linear + folded BN) + LeakyReLU(0.2).  f32 accumulate/epilogue.
    h = jnp.dot(x, w1_ref[...], preferred_element_type=jnp.float32) + b1_ref[...]
    h = jnp.where(h > 0, h, 0.2 * h)

    # Layer 2 (Linear + folded BN) + LeakyReLU(0.2).
    h = jnp.dot(h.astype(w2_ref.dtype), w2_ref[...],
                preferred_element_type=jnp.float32) + b2_ref[...]
    h = jnp.where(h > 0, h, 0.2 * h)

    # Output layer: Linear(hidden -> padded 2*latent).
    y = jnp.dot(h.astype(w3_ref.dtype), w3_ref[...],
                preferred_element_type=jnp.float32) + b3_ref[...]
    out_ref[...] = y.astype(out_ref.dtype)


def make_encoder_params(key, input_dim, hidden_dims=(100, 50), latent_dim=20,
                        eps=1e-5, compute_dtype=jnp.bfloat16):
    """PyTorch-style init, generic BN fold, lane-padding to 128 columns.

    Returns (w1, b1, w2, b2, w3, b3) with weights in `compute_dtype` and
    biases in f32, shapes padded so every matmul N dim is a multiple of 128.
    """
    dims = (input_dim,) + tuple(hidden_dims) + (2 * latent_dim,)
    n_layers = len(dims) - 1
    keys = jax.random.split(key, 6 * n_layers)
    ki = 0
    params = []
    prev_pad = input_dim            # input features are not padded
    for li in range(n_layers):
        fan_in, fan_out = dims[li], dims[li + 1]
        bound = 1.0 / float(fan_in) ** 0.5
        # nn.Linear: weight (out, in) ~ U(-bound, bound); stored transposed.
        w = jax.random.uniform(keys[ki], (fan_in, fan_out), jnp.float32,
                               -bound, bound); ki += 1
        b = jax.random.uniform(keys[ki], (fan_out,), jnp.float32,
                               -bound, bound); ki += 1
        if li < len(hidden_dims):
            # Generic BatchNorm1d eval-mode fold (works for real checkpoints).
            gamma = 1.0 + 0.1 * jax.random.normal(keys[ki], (fan_out,),
                                                  jnp.float32); ki += 1
            beta = 0.1 * jax.random.normal(keys[ki], (fan_out,),
                                           jnp.float32); ki += 1
            running_mean = 0.05 * jax.random.normal(keys[ki], (fan_out,),
                                                    jnp.float32); ki += 1
            running_var = 1.0 + 0.1 * jax.random.uniform(keys[ki], (fan_out,),
                                                         jnp.float32); ki += 1
            scale = gamma / jnp.sqrt(running_var + eps)
            shift = beta - running_mean * scale
            w = w * scale[None, :]
            b = b * scale + shift
        # Zero-pad: rows to previous layer's padded width, cols to 128 multiple.
        fan_out_pad = _round_up(fan_out, 128)
        w_p = jnp.zeros((prev_pad, fan_out_pad), jnp.float32)
        w_p = w_p.at[:fan_in, :fan_out].set(w)
        b_p = jnp.zeros((fan_out_pad,), jnp.float32).at[:fan_out].set(b)
        params.append(w_p.astype(compute_dtype))
        params.append(b_p.reshape(1, fan_out_pad))      # keep bias in f32
        prev_pad = fan_out_pad
    return tuple(params)


@functools.partial(jax.jit, static_argnames=("latent_dim",))
def encoder_forward(x, params, latent_dim=20):
    w1, b1, w2, b2, w3, b3 = params
    B, in_dim = x.shape
    out_pad = w3.shape[1]

    # Batch tiling: stream activations, keep weights resident.
    tile_b = min(512, _round_up(B, 8))
    n_tiles = pl.cdiv(B, tile_b)
    b_pad = n_tiles * tile_b
    if b_pad != B:
        x = jnp.pad(x, ((0, b_pad - B), (0, 0)))
    x = x.astype(w1.dtype)

    flops = 2 * b_pad * (in_dim * w1.shape[1]
                         + w2.shape[0] * w2.shape[1]
                         + w3.shape[0] * w3.shape[1])
    bytes_accessed = (x.size * x.dtype.itemsize
                      + b_pad * out_pad * 4
                      + sum(p.size * p.dtype.itemsize for p in params))

    out = pl.pallas_call(
        encoder_kernel,
        out_shape=jax.ShapeDtypeStruct((b_pad, out_pad), jnp.float32),
        grid=(n_tiles,),
        in_specs=[
            pl.BlockSpec((tile_b, in_dim), lambda i: (i, 0)),   # streamed x
            pl.BlockSpec(w1.shape, lambda i: (0, 0)),           # resident params
            pl.BlockSpec(b1.shape, lambda i: (0, 0)),
            pl.BlockSpec(w2.shape, lambda i: (0, 0)),
            pl.BlockSpec(b2.shape, lambda i: (0, 0)),
            pl.BlockSpec(w3.shape, lambda i: (0, 0)),
            pl.BlockSpec(b3.shape, lambda i: (0, 0)),
        ],
        out_specs=pl.BlockSpec((tile_b, out_pad), lambda i: (i, 0)),
        compiler_params=pltpu.CompilerParams(
            dimension_semantics=("parallel",)),
        cost_estimate=pl.CostEstimate(flops=int(flops), transcendentals=0,
                                      bytes_accessed=int(bytes_accessed)),
    )(x, w1, b1, w2, b2, w3, b3)

    # Drop batch + lane padding BEFORE the view(-1, latent, 2) pairing.
    out = out[:B, :2 * latent_dim]
    return out.reshape(B, latent_dim, 2)


def encoder_reference(x, params, latent_dim=20):
    """Pure-JAX reference (same bf16 operand rounding as the kernel)."""
    w1, b1, w2, b2, w3, b3 = params
    h = jnp.dot(x.astype(w1.dtype), w1,
                preferred_element_type=jnp.float32) + b1
    h = jnp.where(h > 0, h, 0.2 * h)
    h = jnp.dot(h.astype(w2.dtype), w2,
                preferred_element_type=jnp.float32) + b2
    h = jnp.where(h > 0, h, 0.2 * h)
    y = jnp.dot(h.astype(w3.dtype), w3,
                preferred_element_type=jnp.float32) + b3
    return y[:, :2 * latent_dim].reshape(x.shape[0], latent_dim, 2)


if __name__ == "__main__":
    key = jax.random.PRNGKey(0)
    k_param, k_x = jax.random.split(key)

    batch = 8
    input_dim = 32
    hidden_dims = (100, 50)
    latent_dim = 20

    params = make_encoder_params(k_param, input_dim, hidden_dims, latent_dim)
    x = jax.random.normal(k_x, (batch, input_dim), jnp.float32)

    out = encoder_forward(x, params, latent_dim=latent_dim)
    out = jax.block_until_ready(out)

    ref = encoder_reference(x, params, latent_dim=latent_dim)
    assert out.shape == (batch, latent_dim, 2), out.shape
    assert jnp.allclose(out, ref, atol=2e-3, rtol=2e-3), "mismatch vs reference"

    print("KERNEL_OK")
</pallas_src>

<mosaic_0001>
module attributes {stable_mosaic.version = 11 : i64} {
  func.func @encoder_kernel(%arg0: i32, %arg1: memref<8x32xbf16, #tpu.memory_space<vmem>>, %arg2: memref<32x128xbf16, #tpu.memory_space<vmem>>, %arg3: memref<1x128xf32, #tpu.memory_space<vmem>>, %arg4: memref<128x128xbf16, #tpu.memory_space<vmem>>, %arg5: memref<1x128xf32, #tpu.memory_space<vmem>>, %arg6: memref<128x128xbf16, #tpu.memory_space<vmem>>, %arg7: memref<1x128xf32, #tpu.memory_space<vmem>>, %arg8: memref<8x128xf32, #tpu.memory_space<vmem>>) attributes {dimension_semantics = [#tpu.dimension_semantics<parallel>], iteration_bounds = array<i64: 1>, scalar_prefetch = 0 : i64, scratch_operands = 0 : i64, tpu.core_type = #tpu.core_type<tc>, window_params = [{transform_indices = @transform_0, window_bounds = array<i64: 8, 32>}, {pipeline_mode = #tpu.pipeline_mode<synchronous>, transform_indices = @transform_1, window_bounds = array<i64: 32, 128>}, {pipeline_mode = #tpu.pipeline_mode<synchronous>, transform_indices = @transform_2, window_bounds = array<i64: 1, 128>}, {pipeline_mode = #tpu.pipeline_mode<synchronous>, transform_indices = @transform_3, window_bounds = array<i64: 128, 128>}, {pipeline_mode = #tpu.pipeline_mode<synchronous>, transform_indices = @transform_4, window_bounds = array<i64: 1, 128>}, {pipeline_mode = #tpu.pipeline_mode<synchronous>, transform_indices = @transform_5, window_bounds = array<i64: 128, 128>}, {pipeline_mode = #tpu.pipeline_mode<synchronous>, transform_indices = @transform_6, window_bounds = array<i64: 1, 128>}, {transform_indices = @transform_7, window_bounds = array<i64: 8, 128>}]} {
    %c0 = arith.constant 0 : index
    %c0_0 = arith.constant 0 : index
    %0 = vector.load %arg1[%c0, %c0_0] : memref<8x32xbf16, #tpu.memory_space<vmem>>, vector<8x32xbf16>
    %c0_1 = arith.constant 0 : index
    %c0_2 = arith.constant 0 : index
    %1 = vector.load %arg2[%c0_1, %c0_2] : memref<32x128xbf16, #tpu.memory_space<vmem>>, vector<32x128xbf16>
    %cst = arith.constant dense<0.000000e+00> : vector<8x128xf32>
    %2 = tpu.matmul %0, %1, %cst {dimension_numbers = #tpu.dot_dimension_numbers<[1], [0], [0], [1], [0, 0, 1, 1], [], []>} : vector<8x32xbf16>, vector<32x128xbf16>, vector<8x128xf32> -> vector<8x128xf32>
    %c0_3 = arith.constant 0 : index
    %c0_4 = arith.constant 0 : index
    %3 = vector.load %arg3[%c0_3, %c0_4] : memref<1x128xf32, #tpu.memory_space<vmem>>, vector<1x128xf32>
    %4 = vector.broadcast %3 : vector<1x128xf32> to vector<8x128xf32>
    %5 = arith.addf %2, %4 : vector<8x128xf32>
    %cst_5 = arith.constant 0.000000e+00 : f32
    %6 = vector.broadcast %cst_5 : f32 to vector<8x128xf32>
    %7 = arith.cmpf ogt, %5, %6 : vector<8x128xf32>
    %cst_6 = arith.constant 2.000000e-01 : f32
    %8 = vector.broadcast %cst_6 : f32 to vector<8x128xf32>
    %9 = arith.mulf %8, %5 : vector<8x128xf32>
    %10 = arith.select %7, %5, %9 : vector<8x128xi1>, vector<8x128xf32>
    %11 = arith.truncf %10 : vector<8x128xf32> to vector<8x128xbf16>
    %c0_7 = arith.constant 0 : index
    %c0_8 = arith.constant 0 : index
    %12 = vector.load %arg4[%c0_7, %c0_8] : memref<128x128xbf16, #tpu.memory_space<vmem>>, vector<128x128xbf16>
    %cst_9 = arith.constant dense<0.000000e+00> : vector<8x128xf32>
    %13 = tpu.matmul %11, %12, %cst_9 {dimension_numbers = #tpu.dot_dimension_numbers<[1], [0], [0], [1], [0, 0, 1, 1], [], []>} : vector<8x128xbf16>, vector<128x128xbf16>, vector<8x128xf32> -> vector<8x128xf32>
    %c0_10 = arith.constant 0 : index
    %c0_11 = arith.constant 0 : index
    %14 = vector.load %arg5[%c0_10, %c0_11] : memref<1x128xf32, #tpu.memory_space<vmem>>, vector<1x128xf32>
    %15 = vector.broadcast %14 : vector<1x128xf32> to vector<8x128xf32>
    %16 = arith.addf %13, %15 : vector<8x128xf32>
    %cst_12 = arith.constant 0.000000e+00 : f32
    %17 = vector.broadcast %cst_12 : f32 to vector<8x128xf32>
    %18 = arith.cmpf ogt, %16, %17 : vector<8x128xf32>
    %cst_13 = arith.constant 2.000000e-01 : f32
    %19 = vector.broadcast %cst_13 : f32 to vector<8x128xf32>
    %20 = arith.mulf %19, %16 : vector<8x128xf32>
    %21 = arith.select %18, %16, %20 : vector<8x128xi1>, vector<8x128xf32>
    %22 = arith.truncf %21 : vector<8x128xf32> to vector<8x128xbf16>
    %c0_14 = arith.constant 0 : index
    %c0_15 = arith.constant 0 : index
    %23 = vector.load %arg6[%c0_14, %c0_15] : memref<128x128xbf16, #tpu.memory_space<vmem>>, vector<128x128xbf16>
    %cst_16 = arith.constant dense<0.000000e+00> : vector<8x128xf32>
    %24 = tpu.matmul %22, %23, %cst_16 {dimension_numbers = #tpu.dot_dimension_numbers<[1], [0], [0], [1], [0, 0, 1, 1], [], []>} : vector<8x128xbf16>, vector<128x128xbf16>, vector<8x128xf32> -> vector<8x128xf32>
    %c0_17 = arith.constant 0 : index
    %c0_18 = arith.constant 0 : index
    %25 = vector.load %arg7[%c0_17, %c0_18] : memref<1x128xf32, #tpu.memory_space<vmem>>, vector<1x128xf32>
    %26 = vector.broadcast %25 : vector<1x128xf32> to vector<8x128xf32>
    %27 = arith.addf %24, %26 : vector<8x128xf32>
    %c0_19 = arith.constant 0 : index
    %c0_20 = arith.constant 0 : index
    %28 = vector.load %arg8[%c0_19, %c0_20] : memref<8x128xf32, #tpu.memory_space<vmem>>, vector<8x128xf32>
    tpu.vector_store %arg8[%c0_19, %c0_20], %27 {strides = array<i32>} : memref<8x128xf32, #tpu.memory_space<vmem>>, vector<8x128xf32>,
    return
  }
  func.func @transform_0(%arg0: i32) -> (i32, i32) {
    %c0_i32 = arith.constant 0 : i32
    %c0_i32_0 = arith.constant 0 : i32
    return %arg0, %c0_i32 : i32, i32
  }
  func.func @transform_1(%arg0: i32) -> (i32, i32) {
    %c0_i32 = arith.constant 0 : i32
    %c0_i32_0 = arith.constant 0 : i32
    %c0_i32_1 = arith.constant 0 : i32
    return %c0_i32, %c0_i32_0 : i32, i32
  }
  func.func @transform_2(%arg0: i32) -> (i32, i32) {
    %c0_i32 = arith.constant 0 : i32
    %c0_i32_0 = arith.constant 0 : i32
    %c0_i32_1 = arith.constant 0 : i32
    return %c0_i32, %c0_i32_0 : i32, i32
  }
  func.func @transform_3(%arg0: i32) -> (i32, i32) {
    %c0_i32 = arith.constant 0 : i32
    %c0_i32_0 = arith.constant 0 : i32
    %c0_i32_1 = arith.constant 0 : i32
    return %c0_i32, %c0_i32_0 : i32, i32
  }
  func.func @transform_4(%arg0: i32) -> (i32, i32) {
    %c0_i32 = arith.constant 0 : i32
    %c0_i32_0 = arith.constant 0 : i32
    %c0_i32_1 = arith.constant 0 : i32
    return %c0_i32, %c0_i32_0 : i32, i32
  }
  func.func @transform_5(%arg0: i32) -> (i32, i32) {
    %c0_i32 = arith.constant 0 : i32
    %c0_i32_0 = arith.constant 0 : i32
    %c0_i32_1 = arith.constant 0 : i32
    return %c0_i32, %c0_i32_0 : i32, i32
  }
  func.func @transform_6(%arg0: i32) -> (i32, i32) {
    %c0_i32 = arith.constant 0 : i32
    %c0_i32_0 = arith.constant 0 : i32
    %c0_i32_1 = arith.constant 0 : i32
    return %c0_i32, %c0_i32_0 : i32, i32
  }
  func.func @transform_7(%arg0: i32) -> (i32, i32) {
    %c0_i32 = arith.constant 0 : i32
    %c0_i32_0 = arith.constant 0 : i32
    return %arg0, %c0_i32 : i32, i32
  }
}

</mosaic_0001>

<llo_original>
// kernel: encoder_forward.1
$region0: #{encoder_forward.1}
  #allocation0 [shape = 'u32[]', space=smem, size = 0x4, offset = 0x4, fixed_abs, tag = 'smem constant byte address 0x4 - core index']
  #allocation1 [shape = 'u32[72,128]{1,0:T(1,128)}', space=vmem, size = 0x9000, scoped, tag = 'internal scratch']
  %s0 = inlined_call_operand.vmem [shape: bf16[8,32], index: 0, kind: input, shape index: {}]
  %s1 = inlined_call_operand.hbm [shape: bf16[32,128], index: 1, kind: input, shape index: {}]
  %s2 = inlined_call_operand.vmem [shape: f32[1,128], index: 2, kind: input, shape index: {}]
  %s3 = inlined_call_operand.hbm [shape: bf16[128,128], index: 3, kind: input, shape index: {}]
  %s4 = inlined_call_operand.vmem [shape: f32[1,128], index: 4, kind: input, shape index: {}]
  %s5 = inlined_call_operand.hbm [shape: bf16[128,128], index: 5, kind: input, shape index: {}]
  %s6 = inlined_call_operand.vmem [shape: f32[1,128], index: 6, kind: input, shape index: {}]
  %s7 = inlined_call_operand.vmem [shape: f32[8,128], index: 7, kind: output, shape index: {}]
  %s8 = sld [smem:[#allocation0]]
  $region50: #{encoder_forward.1} parent=0
    _
  %s10 = ssub.s32 1, %s8
  %s11 = scalar_select 0, %s10, %s8
  $region1: #{encoder_forward.1} parent=0
    #allocation2 [shape = 'u8[8192]{0}', space=vmem, size = 0x2000, scoped, tag = 'input window, operand 1, single buffered']
    #allocation3 [shape = 's32[1]{0}', space=sflag, size = 0x4, scoped, tag = 'scoped memory for encoder_forward.1']
    #allocation4 [shape = 'u8[32768]{0}', space=vmem, size = 0x8000, scoped, tag = 'input window, operand 3, single buffered']
    #allocation5 [shape = 's32[1]{0}', space=sflag, size = 0x4, scoped, tag = 'scoped memory for encoder_forward.1']
    #allocation6 [shape = 'u8[32768]{0}', space=vmem, size = 0x8000, scoped, tag = 'input window, operand 5, single buffered']
    %12 = vsyncpa [#allocation3], 0
    %13 = vsyncpa [#allocation5], 0
    // Predicated region
    $region2: #{encoder_forward.1} parent=1 // pred_check
      _
    $region3: #{encoder_forward.1} parent=1 // pred_check_branch
      %15 = sbr.rel (0) target = $region5
    $region4: #{encoder_forward.1} parent=1 // pred_region
      _
    $region5: #{encoder_forward.1} parent=1 // pred_fallthru
      _
    // Predicated region
    $region6: #{encoder_forward.1} parent=1 // pred_check
      _
    $region7: #{encoder_forward.1} parent=1 // pred_check_branch
      %17 = sbr.rel (0) target = $region9
    $region8: #{encoder_forward.1} parent=1 // pred_region
      %19 = vsyncadd [#allocation3], 0
      %s20 = sshll.u32 %s1, 4
      %s21 = int_to_ptr.hbm [resolvable:$true] %s20
      %s22 = sshll.u32 [#allocation2], 4
      %s23 = int_to_ptr.vmem [resolvable:$true] %s22
      %28 = dma.hbm_to_vmem [thread:$0]  %s21, 256, %s23, [#allocation3], 64, 64, 4
    $region9: #{encoder_forward.1} parent=1 // pred_fallthru
      _
    // Predicated region
    $region10: #{encoder_forward.1} parent=1 // pred_check
      _
    $region11: #{encoder_forward.1} parent=1 // pred_check_branch
      %30 = sbr.rel (0) target = $region13
    $region12: #{encoder_forward.1} parent=1 // pred_region
      _
    $region13: #{encoder_forward.1} parent=1 // pred_fallthru
      _
    // Predicated region
    $region14: #{encoder_forward.1} parent=1 // pred_check
      _
    $region15: #{encoder_forward.1} parent=1 // pred_check_branch
      %32 = sbr.rel (0) target = $region17
    $region16: #{encoder_forward.1} parent=1 // pred_region
      %34 = vsyncadd [#allocation5], 0
      %s35 = sshll.u32 %s3, 4
      %s36 = int_to_ptr.hbm [resolvable:$true] %s35
      %s37 = sshll.u32 [#allocation4], 4
      %s38 = int_to_ptr.vmem [resolvable:$true] %s37
      %43 = dma.hbm_to_vmem [thread:$0]  %s36, 1024, %s38, [#allocation5], 64, 64, 4
    $region17: #{encoder_forward.1} parent=1 // pred_fallthru
      _
    // Predicated region
    $region18: #{encoder_forward.1} parent=1 // pred_check
      _
    $region19: #{encoder_forward.1} parent=1 // pred_check_branch
      %45 = sbr.rel (0) target = $region21
    $region20: #{encoder_forward.1} parent=1 // pred_region
      _
    $region21: #{encoder_forward.1} parent=1 // pred_fallthru
      _
    // Predicated region
    $region22: #{encoder_forward.1} parent=1 // pred_check
      _
    $region23: #{encoder_forward.1} parent=1 // pred_check_branch
      %47 = sbr.rel (0) target = $region25
    $region24: #{encoder_forward.1} parent=1 // pred_region
      %49 = vsyncadd [#allocation5], 0
      %s50 = sshll.u32 %s5, 4
      %s51 = int_to_ptr.hbm [resolvable:$true] %s50
      %s52 = sshll.u32 [#allocation6], 4
      %s53 = int_to_ptr.vmem [resolvable:$true] %s52
      %58 = dma.hbm_to_vmem [thread:$0]  %s51, 1024, %s53, [#allocation5], 64, 64, 4
    $region25: #{encoder_forward.1} parent=1 // pred_fallthru
      _
    // Predicated region
    $region26: #{encoder_forward.1} parent=1 // pred_check
      _
    $region27: #{encoder_forward.1} parent=1 // pred_check_branch
      %60 = sbr.rel (0) target = $region29
    $region28: #{encoder_forward.1} parent=1 // pred_region
      _
    $region29: #{encoder_forward.1} parent=1 // pred_fallthru
      _
    // Predicated region
    $region30: #{encoder_forward.1} parent=1 // pred_check
      _
    $region31: #{encoder_forward.1} parent=1 // pred_check_branch
      %62 = sbr.rel (0) target = $region33
    $region32: #{encoder_forward.1} parent=1 // pred_region
      %64 = dma.done [#allocation3], 256
    $region33: #{encoder_forward.1} parent=1 // pred_fallthru
      _
    // Predicated region
    $region34: #{encoder_forward.1} parent=1 // pred_check
      _
    $region35: #{encoder_forward.1} parent=1 // pred_check_branch
      %66 = sbr.rel (0) target = $region37
    $region36: #{encoder_forward.1} parent=1 // pred_region
      %68 = dma.done [#allocation5], 1024
    $region37: #{encoder_forward.1} parent=1 // pred_fallthru
      _
    // Predicated region
    $region38: #{encoder_forward.1} parent=1 // pred_check
      _
    $region39: #{encoder_forward.1} parent=1 // pred_check_branch
      %70 = sbr.rel (0) target = $region41
    $region40: #{encoder_forward.1} parent=1 // pred_region
      %72 = dma.done [#allocation5], 1024
    $region41: #{encoder_forward.1} parent=1 // pred_fallthru
      _
    %v74 = vld [vmem:[%s0] sm:$0xf]
    %v75 = vld [vmem:[#allocation2] sm:$0xf]
    %v76 = vld [vmem:[#allocation2 + $0x4] sm:$0xf]
    %v77 = vld [vmem:[#allocation2 + $0x8] sm:$0xf]
    %v78 = vld [vmem:[#allocation2 + $0xc] sm:$0xf]
    %v79 = vld [vmem:[%s2] sm:$0x1]
    %v81 = vperm.slane %v79, 0
    %v87 = vunpack.c.l.b16 %v75
    %v88 = vunpack.c.l.b16 %v76
    %v89 = vunpack.c.l.b16 %v77
    %v90 = vunpack.c.l.b16 %v78
    %v91 = vpack.c.b16 %v88, %v87
    %v92 = vpack.c.b16 %v90, %v89
    %vm95 = vcmask 261120
    %v97 = vsel %vm95, %v74, 0
    %99 = vmatpush.bf16.msra.mxu0 0
    %100 = vmatpush.bf16.msra.mxu0 0
    %101 = vmatpush.bf16.msra.mxu0 0
    %102 = vmatpush.bf16.msra.mxu0 0
    %103 = vmatpush.bf16.msra.mxu0 0
    %104 = vmatpush.bf16.msra.mxu0 0
    %105 = vmatpush.bf16.msra.mxu0 %v92
    %106 = vmatpush.bf16.msra.mxu0 %v91
    %107 = vmatmul.bf16.gmra.mxu0 %v97
    %v108 = vpop.f32.mrf.mxu0
    %v109 = vadd.f32 %v81, %v108
    %v110 = vpop.f32.mrf.mxu0
    %111 = vdwg.mxu0
    %vm112 = vcmp.gt.f32.partialorder %v109, 0.0
    %v113 = vmul.f32 %v109, 0.2
    %v114 = vsel %vm112, %v109, %v113
    %v115 = vpack.c.bf16 %v114, %v114
    %v116 = vld [vmem:[#allocation4] sm:$0xf]
    %v117 = vld [vmem:[#allocation4 + $0x4] sm:$0xf]
    %v118 = vld [vmem:[#allocation4 + $0x8] sm:$0xf]
    %v119 = vld [vmem:[#allocation4 + $0xc] sm:$0xf]
    %v120 = vld [vmem:[#allocation4 + $0x10] sm:$0xf]
    %v121 = vld [vmem:[#allocation4 + $0x14] sm:$0xf]
    %v122 = vld [vmem:[#allocation4 + $0x18] sm:$0xf]
    %v123 = vld [vmem:[#allocation4 + $0x1c] sm:$0xf]
    %v124 = vld [vmem:[#allocation4 + $0x20] sm:$0xf]
    %v125 = vld [vmem:[#allocation4 + $0x24] sm:$0xf]
    %v126 = vld [vmem:[#allocation4 + $0x28] sm:$0xf]
    %v127 = vld [vmem:[#allocation4 + $0x2c] sm:$0xf]
    %v128 = vld [vmem:[#allocation4 + $0x30] sm:$0xf]
    %v129 = vld [vmem:[#allocation4 + $0x34] sm:$0xf]
    %v130 = vld [vmem:[#allocation4 + $0x38] sm:$0xf]
    %v131 = vld [vmem:[#allocation4 + $0x3c] sm:$0xf]
    %v132 = vld [vmem:[%s4] sm:$0x1]
    %v134 = vperm.slane %v132, 0
    %v152 = vunpack.c.l.b16 %v116
    %v153 = vunpack.c.l.b16 %v117
    %v154 = vunpack.c.l.b16 %v118
    %v155 = vunpack.c.l.b16 %v119
    %v156 = vunpack.c.l.b16 %v120
    %v157 = vunpack.c.l.b16 %v121
    %v158 = vunpack.c.l.b16 %v122
    %v159 = vunpack.c.l.b16 %v123
    %v160 = vunpack.c.l.b16 %v124
    %v161 = vunpack.c.l.b16 %v125
    %v162 = vunpack.c.l.b16 %v126
    %v163 = vunpack.c.l.b16 %v127
    %v164 = vunpack.c.l.b16 %v128
    %v165 = vunpack.c.l.b16 %v129
    %v166 = vunpack.c.l.b16 %v130
    %v167 = vunpack.c.l.b16 %v131
    %v168 = vpack.c.b16 %v153, %v152
    %v169 = vpack.c.b16 %v155, %v154
    %v170 = vpack.c.b16 %v157, %v156
    %v171 = vpack.c.b16 %v159, %v158
    %v172 = vpack.c.b16 %v161, %v160
    %v173 = vpack.c.b16 %v163, %v162
    %v174 = vpack.c.b16 %v165, %v164
    %v175 = vpack.c.b16 %v167, %v166
    %184 = vmatpush.bf16.msra.mxu0 %v175
    %185 = vmatpush.bf16.msra.mxu0 %v174
    %186 = vmatpush.bf16.msra.mxu0 %v173
    %187 = vmatpush.bf16.msra.mxu0 %v172
    %188 = vmatpush.bf16.msra.mxu0 %v171
    %189 = vmatpush.bf16.msra.mxu0 %v170
    %190 = vmatpush.bf16.msra.mxu0 %v169
    %191 = vmatpush.bf16.msra.mxu0 %v168
    %192 = vmatmul.bf16.gmra.mxu0 %v115
    %v193 = vpop.f32.mrf.mxu0
    %v194 = vadd.f32 %v134, %v193
    %v195 = vpop.f32.mrf.mxu0
    %196 = vdwg.mxu0
    %vm197 = vcmp.gt.f32.partialorder %v194, 0.0
    %v198 = vmul.f32 %v194, 0.2
    %v199 = vsel %vm197, %v194, %v198
    %v200 = vpack.c.bf16 %v199, %v199
    %v201 = vld [vmem:[#allocation6] sm:$0xf]
    %v202 = vld [vmem:[#allocation6 + $0x4] sm:$0xf]
    %v203 = vld [vmem:[#allocation6 + $0x8] sm:$0xf]
    %v204 = vld [vmem:[#allocation6 + $0xc] sm:$0xf]
    %v205 = vld [vmem:[#allocation6 + $0x10] sm:$0xf]
    %v206 = vld [vmem:[#allocation6 + $0x14] sm:$0xf]
    %v207 = vld [vmem:[#allocation6 + $0x18] sm:$0xf]
    %v208 = vld [vmem:[#allocation6 + $0x1c] sm:$0xf]
    %v209 = vld [vmem:[#allocation6 + $0x20] sm:$0xf]
    %v210 = vld [vmem:[#allocation6 + $0x24] sm:$0xf]
    %v211 = vld [vmem:[#allocation6 + $0x28] sm:$0xf]
    %v212 = vld [vmem:[#allocation6 + $0x2c] sm:$0xf]
    %v213 = vld [vmem:[#allocation6 + $0x30] sm:$0xf]
    %v214 = vld [vmem:[#allocation6 + $0x34] sm:$0xf]
    %v215 = vld [vmem:[#allocation6 + $0x38] sm:$0xf]
    %v216 = vld [vmem:[#allocation6 + $0x3c] sm:$0xf]
    %v217 = vld [vmem:[%s6] sm:$0x1]
    %v219 = vperm.slane %v217, 0
    %v237 = vunpack.c.l.b16 %v201
    %v238 = vunpack.c.l.b16 %v202
    %v239 = vunpack.c.l.b16 %v203
    %v240 = vunpack.c.l.b16 %v204
    %v241 = vunpack.c.l.b16 %v205
    %v242 = vunpack.c.l.b16 %v206
    %v243 = vunpack.c.l.b16 %v207
    %v244 = vunpack.c.l.b16 %v208
    %v245 = vunpack.c.l.b16 %v209
    %v246 = vunpack.c.l.b16 %v210
    %v247 = vunpack.c.l.b16 %v211
    %v248 = vunpack.c.l.b16 %v212
    %v249 = vunpack.c.l.b16 %v213
    %v250 = vunpack.c.l.b16 %v214
    %v251 = vunpack.c.l.b16 %v215
    %v252 = vunpack.c.l.b16 %v216
    %v253 = vpack.c.b16 %v238, %v237
    %v254 = vpack.c.b16 %v240, %v239
    %v255 = vpack.c.b16 %v242, %v241
    %v256 = vpack.c.b16 %v244, %v243
    %v257 = vpack.c.b16 %v246, %v245
    %v258 = vpack.c.b16 %v248, %v247
    %v259 = vpack.c.b16 %v250, %v249
    %v260 = vpack.c.b16 %v252, %v251
    %269 = vmatpush.bf16.msra.mxu0 %v260
    %270 = vmatpush.bf16.msra.mxu0 %v259
    %271 = vmatpush.bf16.msra.mxu0 %v258
    %272 = vmatpush.bf16.msra.mxu0 %v257
    %273 = vmatpush.bf16.msra.mxu0 %v256
    %274 = vmatpush.bf16.msra.mxu0 %v255
    %275 = vmatpush.bf16.msra.mxu0 %v254
    %276 = vmatpush.bf16.msra.mxu0 %v253
    %277 = vmatmul.bf16.gmra.mxu0 %v200
    %v278 = vpop.f32.mrf.mxu0
    %v279 = vadd.f32 %v219, %v278
    %v280 = vpop.f32.mrf.mxu0
    %281 = vdwg.mxu0
    %282 = vst [vmem:[%s7] sm:$0xff] %v279
    // Predicated region
    $region42: #{encoder_forward.1} parent=1 // pred_check
      _
    $region43: #{encoder_forward.1} parent=1 // pred_check_branch
      %284 = sbr.rel (0) target = $region45
    $region44: #{encoder_forward.1} parent=1 // pred_region
      _
    $region45: #{encoder_forward.1} parent=1 // pred_fallthru
      _
    // Predicated region
    $region46: #{encoder_forward.1} parent=1 // pred_check
      _
    $region47: #{encoder_forward.1} parent=1 // pred_check_branch
      %286 = sbr.rel (0) target = $region49
    $region48: #{encoder_forward.1} parent=1 // pred_region
      _
    $region49: #{encoder_forward.1} parent=1 // pred_fallthru
      _
    %287 = vsyncpa [#allocation3], 1
    %288 = vsyncpa [#allocation5], 1

</llo_original>
